<compile_context>
chip_gen: v7x
topology: tpu7x:2x2x1
jax: 0.10.0
libtpu: 0.0.40
codegen_flags: <defaults>
</compile_context>

<pallas_src>
import functools

import jax
import jax.numpy as jnp
from jax import lax
from jax.experimental import pallas as pl
from jax.experimental.pallas import tpu as pltpu

IN_F = 4    # CartPole observation size
HID_F = 10  # hidden units

_CHUNK_ROWS = 16                 # sublane-rows per inner step; multiple of 16 keeps bf16 tiles aligned
_GRAN = _CHUNK_ROWS * 128        # batch-padding granule of the packed layout (2048 elements)


# ---------------------------------------------------------------------------
# Kernel bodies
# ---------------------------------------------------------------------------
def _mlp_columns(x0, x1, x2, x3, w1_ref, b1_ref, w2_ref, b2_ref):
    """relu(x @ w1 + b1) @ w2 + b2 with the 4 features given as separate planes.

    Weights/biases are SMEM scalars; everything is VPU broadcast math (the
    contractions K=4 / K=10 / N=1 are far too small for the MXU to pay off).
    """
    y = jnp.zeros(x0.shape, jnp.float32) + b2_ref[0]
    for j in range(HID_F):  # fully unrolled: 10 hidden units
        h = (x0 * w1_ref[0 * HID_F + j]
             + x1 * w1_ref[1 * HID_F + j]
             + x2 * w1_ref[2 * HID_F + j]
             + x3 * w1_ref[3 * HID_F + j]
             + b1_ref[j])
        h = jnp.maximum(h, 0.0)          # ReLU
        y = y + h * w2_ref[j]
    return y


def _rl_mlp_small_kernel(x_ref, w1_ref, b1_ref, w2_ref, b2_ref, o_ref):
    # Small-batch fast path: whole problem in one grid step, x kept in its
    # natural (B, IN_F) layout -> no wrapper pad / transpose / slice HLOs.
    x = x_ref[...].astype(jnp.float32)
    y = _mlp_columns(x[:, 0:1], x[:, 1:2], x[:, 2:3], x[:, 3:4],
                     w1_ref, b1_ref, w2_ref, b2_ref)
    o_ref[...] = y.astype(o_ref.dtype)


def _rl_mlp_tiled_kernel(xt_ref, w1_ref, b1_ref, w2_ref, b2_ref, o_ref):
    # xt_ref : (IN_F, R, 128) VMEM -- batch packed across sublanes AND lanes
    # o_ref  : (R, 128)       VMEM -- fully dense output tile (unmasked stores)
    # Inner loop over 16-row chunks keeps ~12 vregs live (no spills) while the
    # per-grid-step DMA tile stays large.
    tile_rows = o_ref.shape[0]
    n_chunks = tile_rows // _CHUNK_ROWS  # static

    def body(c, carry):
        r0 = pl.multiple_of(c * _CHUNK_ROWS, _CHUNK_ROWS)
        rows = pl.ds(r0, _CHUNK_ROWS)
        x0 = xt_ref[0, rows, :].astype(jnp.float32)
        x1 = xt_ref[1, rows, :].astype(jnp.float32)
        x2 = xt_ref[2, rows, :].astype(jnp.float32)
        x3 = xt_ref[3, rows, :].astype(jnp.float32)
        y = _mlp_columns(x0, x1, x2, x3, w1_ref, b1_ref, w2_ref, b2_ref)
        o_ref[rows, :] = y.astype(o_ref.dtype)
        return carry

    lax.fori_loop(0, n_chunks, body, 0)


# ---------------------------------------------------------------------------
# Wrapper
# ---------------------------------------------------------------------------
def _flatten_params(w1, b1, w2, b2):
    w1f = jnp.asarray(w1, jnp.float32).reshape(-1)  # w1f[k*HID_F + j] = w1[k, j]
    b1f = jnp.asarray(b1, jnp.float32).reshape(-1)  # (HID_F,)
    w2f = jnp.asarray(w2, jnp.float32).reshape(-1)  # (HID_F,)
    b2f = jnp.asarray(b2, jnp.float32).reshape(-1)  # (1,)
    return w1f, b1f, w2f, b2f


_SMEM_SPEC = pl.BlockSpec(memory_space=pltpu.SMEM)


@functools.partial(jax.jit,
                   static_argnames=("tile_b", "small_batch_max", "input_dtype"))
def rl_model_forward(x, w1, b1, w2, b2, *, tile_b=65536, small_batch_max=1024,
                     input_dtype=jnp.float32):
    """y = relu(x @ w1 + b1) @ w2 + b2.

    w1: (4, 10), w2: (10, 1)  (i.e. PyTorch nn.Linear weights transposed).
    """
    B = x.shape[0]
    assert x.shape[1] == IN_F
    w1f, b1f, w2f, b2f = _flatten_params(w1, b1, w2, b2)

    # ---------------- small-batch fast path (RL / CartPole regime) ----------
    if B <= small_batch_max:
        return pl.pallas_call(
            _rl_mlp_small_kernel,
            out_shape=jax.ShapeDtypeStruct((B, 1), jnp.float32),
            grid_spec=pltpu.PrefetchScalarGridSpec(
                num_scalar_prefetch=0,
                grid=(1,),
                in_specs=[
                    pl.BlockSpec((B, IN_F), lambda i: (0, 0)),  # full array, no padding needed
                    _SMEM_SPEC, _SMEM_SPEC, _SMEM_SPEC, _SMEM_SPEC,
                ],
                out_specs=pl.BlockSpec((B, 1), lambda i: (0, 0)),
            ),
            compiler_params=pltpu.CompilerParams(
                dimension_semantics=("arbitrary",)),
        )(x, w1f, b1f, w2f, b2f)

    # ---------------- large-batch tiled path ---------------------------------
    # Tiling: large per-step tiles (amortize per-step pipeline overhead) but
    # force >= 2 grid steps whenever possible so "parallel" shards the batch
    # across both TensorCores on v7x (neutral on v5e/v6e).
    n_gran = -(-B // _GRAN)
    target_gran = max(1, tile_b // _GRAN)
    g = max(1, -(-n_gran // target_gran))
    if n_gran >= 2:
        g = max(g, 2)
    gran_per_tile = -(-n_gran // g)
    tile_rows = gran_per_tile * _CHUNK_ROWS        # multiple of 16 sublane-rows
    total_rows = g * tile_rows
    bp = total_rows * 128                          # padded batch, multiple of tile

    # Layout plumbing (not compute): cast (+ optional bf16), pad, and transpose
    # so batch element n lands at (row = n // 128, lane = n % 128).
    x_cast = x.astype(input_dtype)
    x_pad = jnp.pad(x_cast, ((0, bp - B), (0, 0)))
    xt = x_pad.T.reshape(IN_F, total_rows, 128)

    out = pl.pallas_call(
        _rl_mlp_tiled_kernel,
        out_shape=jax.ShapeDtypeStruct((total_rows, 128), jnp.float32),
        grid_spec=pltpu.PrefetchScalarGridSpec(
            num_scalar_prefetch=0,
            grid=(g,),
            in_specs=[
                pl.BlockSpec((IN_F, tile_rows, 128), lambda i: (0, i, 0)),
                _SMEM_SPEC, _SMEM_SPEC, _SMEM_SPEC, _SMEM_SPEC,
            ],
            out_specs=pl.BlockSpec((tile_rows, 128), lambda i: (i, 0)),
        ),
        compiler_params=pltpu.CompilerParams(
            dimension_semantics=("parallel",)),
    )(xt, w1f, b1f, w2f, b2f)

    # Padded rows hold relu(b1)@w2 + b2 (nonzero garbage) -> always slice to :B.
    return out.reshape(bp)[:B].reshape(B, 1)


# ---------------------------------------------------------------------------
# Init / reference / self-test
# ---------------------------------------------------------------------------
def init_params(key):
    """Deterministic init mimicking PyTorch nn.Linear defaults (U(+/- 1/sqrt(fan_in)))."""
    k1, k2, k3, k4 = jax.random.split(key, 4)
    bound1 = 1.0 / jnp.sqrt(4.0)
    bound2 = 1.0 / jnp.sqrt(10.0)
    w1 = jax.random.uniform(k1, (IN_F, HID_F), jnp.float32, -bound1, bound1)  # (in, out)
    b1 = jax.random.uniform(k2, (HID_F,), jnp.float32, -bound1, bound1)
    w2 = jax.random.uniform(k3, (HID_F, 1), jnp.float32, -bound2, bound2)     # (in, out)
    b2 = jax.random.uniform(k4, (1,), jnp.float32, -bound2, bound2)
    return w1, b1, w2, b2


def _reference(x, w1, b1, w2, b2):
    return jnp.maximum(x @ w1 + b1, 0.0) @ w2 + b2


if __name__ == "__main__":
    key = jax.random.PRNGKey(0)
    kp, k1, k2, k3 = jax.random.split(key, 4)
    w1, b1, w2, b2 = init_params(kp)

    # 1) CartPole-style small batch -> single-step fast path (no pad/transpose HLOs).
    x_small = jax.random.normal(k1, (8, IN_F), dtype=jnp.float32)
    y_small = jax.block_until_ready(rl_model_forward(x_small, w1, b1, w2, b2))
    assert y_small.shape == (8, 1)
    assert jnp.allclose(y_small, _reference(x_small, w1, b1, w2, b2), atol=1e-5), \
        "mismatch vs reference (B=8, fast path)"

    # 2) Odd batch size (not a multiple of 8/128), still on the fast path.
    x_odd = jax.random.normal(k2, (300, IN_F), dtype=jnp.float32)
    y_odd = jax.block_until_ready(rl_model_forward(x_odd, w1, b1, w2, b2))
    assert y_odd.shape == (300, 1)
    assert jnp.allclose(y_odd, _reference(x_odd, w1, b1, w2, b2), atol=1e-5), \
        "mismatch vs reference (B=300, fast path)"

    # 3) Tiled path: packed sublane+lane layout, >=2 grid steps, padded batch.
    x_big = jax.random.normal(k3, (4500, IN_F), dtype=jnp.float32)
    y_big = jax.block_until_ready(rl_model_forward(x_big, w1, b1, w2, b2))
    assert y_big.shape == (4500, 1)
    assert jnp.allclose(y_big, _reference(x_big, w1, b1, w2, b2), atol=1e-5), \
        "mismatch vs reference (B=4500, tiled path)"

    # 4) bf16-input variant of the tiled path (halves the HBM x stream; f32 math).
    y_bf16 = jax.block_until_ready(
        rl_model_forward(x_big, w1, b1, w2, b2, input_dtype=jnp.bfloat16))
    assert y_bf16.shape == (4500, 1)
    assert jnp.allclose(y_bf16, _reference(x_big, w1, b1, w2, b2), atol=5e-2), \
        "mismatch vs reference (B=4500, tiled bf16 path)"

    print("KERNEL_OK")
</pallas_src>

<mosaic_0001>
module attributes {stable_mosaic.version = 11 : i64} {
  func.func @_rl_mlp_small_kernel(%arg0: i32, %arg1: memref<8x4xf32, #tpu.memory_space<vmem>>, %arg2: memref<40xf32, #tpu.memory_space<smem>>, %arg3: memref<10xf32, #tpu.memory_space<smem>>, %arg4: memref<10xf32, #tpu.memory_space<smem>>, %arg5: memref<1xf32, #tpu.memory_space<smem>>, %arg6: memref<8x1xf32, #tpu.memory_space<vmem>>) attributes {dimension_semantics = [#tpu.dimension_semantics<arbitrary>], iteration_bounds = array<i64: 1>, scalar_prefetch = 0 : i64, scratch_operands = 0 : i64, tpu.core_type = #tpu.core_type<tc>, window_params = [{pipeline_mode = #tpu.pipeline_mode<synchronous>, transform_indices = @transform_0, window_bounds = array<i64: 8, 4>}, {transform_indices = @transform_1, window_bounds = array<i64: 40>}, {transform_indices = @transform_2, window_bounds = array<i64: 10>}, {transform_indices = @transform_3, window_bounds = array<i64: 10>}, {transform_indices = @transform_4, window_bounds = array<i64: 1>}, {pipeline_mode = #tpu.pipeline_mode<synchronous>, transform_indices = @transform_5, window_bounds = array<i64: 8, 1>}]} {
    %c0 = arith.constant 0 : index
    %c0_0 = arith.constant 0 : index
    %0 = vector.load %arg1[%c0, %c0_0] : memref<8x4xf32, #tpu.memory_space<vmem>>, vector<8x4xf32>
    %1 = vector.extract_strided_slice %0 {offsets = [0, 0], sizes = [8, 1], strides = [1, 1]} : vector<8x4xf32> to vector<8x1xf32>
    %2 = vector.extract_strided_slice %0 {offsets = [0, 1], sizes = [8, 1], strides = [1, 1]} : vector<8x4xf32> to vector<8x1xf32>
    %3 = vector.extract_strided_slice %0 {offsets = [0, 2], sizes = [8, 1], strides = [1, 1]} : vector<8x4xf32> to vector<8x1xf32>
    %4 = vector.extract_strided_slice %0 {offsets = [0, 3], sizes = [8, 1], strides = [1, 1]} : vector<8x4xf32> to vector<8x1xf32>
    %cst = arith.constant 0.000000e+00 : f32
    %5 = vector.broadcast %cst : f32 to vector<8x1xf32>
    %c0_1 = arith.constant 0 : index
    %6 = memref.load %arg5[%c0_1] : memref<1xf32, #tpu.memory_space<smem>>
    %7 = vector.broadcast %6 : f32 to vector<8x1xf32>
    %8 = arith.addf %5, %7 : vector<8x1xf32>
    %c0_2 = arith.constant 0 : index
    %9 = memref.load %arg2[%c0_2] : memref<40xf32, #tpu.memory_space<smem>>
    %10 = vector.broadcast %9 : f32 to vector<8x1xf32>
    %11 = arith.mulf %1, %10 : vector<8x1xf32>
    %c10 = arith.constant 10 : index
    %12 = memref.load %arg2[%c10] : memref<40xf32, #tpu.memory_space<smem>>
    %13 = vector.broadcast %12 : f32 to vector<8x1xf32>
    %14 = arith.mulf %2, %13 : vector<8x1xf32>
    %15 = arith.addf %11, %14 : vector<8x1xf32>
    %c20 = arith.constant 20 : index
    %16 = memref.load %arg2[%c20] : memref<40xf32, #tpu.memory_space<smem>>
    %17 = vector.broadcast %16 : f32 to vector<8x1xf32>
    %18 = arith.mulf %3, %17 : vector<8x1xf32>
    %19 = arith.addf %15, %18 : vector<8x1xf32>
    %c30 = arith.constant 30 : index
    %20 = memref.load %arg2[%c30] : memref<40xf32, #tpu.memory_space<smem>>
    %21 = vector.broadcast %20 : f32 to vector<8x1xf32>
    %22 = arith.mulf %4, %21 : vector<8x1xf32>
    %23 = arith.addf %19, %22 : vector<8x1xf32>
    %c0_3 = arith.constant 0 : index
    %24 = memref.load %arg3[%c0_3] : memref<10xf32, #tpu.memory_space<smem>>
    %25 = vector.broadcast %24 : f32 to vector<8x1xf32>
    %26 = arith.addf %23, %25 : vector<8x1xf32>
    %cst_4 = arith.constant 0.000000e+00 : f32
    %27 = vector.broadcast %cst_4 : f32 to vector<8x1xf32>
    %28 = arith.maximumf %26, %27 : vector<8x1xf32>
    %c0_5 = arith.constant 0 : index
    %29 = memref.load %arg4[%c0_5] : memref<10xf32, #tpu.memory_space<smem>>
    %30 = vector.broadcast %29 : f32 to vector<8x1xf32>
    %31 = arith.mulf %28, %30 : vector<8x1xf32>
    %32 = arith.addf %8, %31 : vector<8x1xf32>
    %c1 = arith.constant 1 : index
    %33 = memref.load %arg2[%c1] : memref<40xf32, #tpu.memory_space<smem>>
    %34 = vector.broadcast %33 : f32 to vector<8x1xf32>
    %35 = arith.mulf %1, %34 : vector<8x1xf32>
    %c11 = arith.constant 11 : index
    %36 = memref.load %arg2[%c11] : memref<40xf32, #tpu.memory_space<smem>>
    %37 = vector.broadcast %36 : f32 to vector<8x1xf32>
    %38 = arith.mulf %2, %37 : vector<8x1xf32>
    %39 = arith.addf %35, %38 : vector<8x1xf32>
    %c21 = arith.constant 21 : index
    %40 = memref.load %arg2[%c21] : memref<40xf32, #tpu.memory_space<smem>>
    %41 = vector.broadcast %40 : f32 to vector<8x1xf32>
    %42 = arith.mulf %3, %41 : vector<8x1xf32>
    %43 = arith.addf %39, %42 : vector<8x1xf32>
    %c31 = arith.constant 31 : index
    %44 = memref.load %arg2[%c31] : memref<40xf32, #tpu.memory_space<smem>>
    %45 = vector.broadcast %44 : f32 to vector<8x1xf32>
    %46 = arith.mulf %4, %45 : vector<8x1xf32>
    %47 = arith.addf %43, %46 : vector<8x1xf32>
    %c1_6 = arith.constant 1 : index
    %48 = memref.load %arg3[%c1_6] : memref<10xf32, #tpu.memory_space<smem>>
    %49 = vector.broadcast %48 : f32 to vector<8x1xf32>
    %50 = arith.addf %47, %49 : vector<8x1xf32>
    %cst_7 = arith.constant 0.000000e+00 : f32
    %51 = vector.broadcast %cst_7 : f32 to vector<8x1xf32>
    %52 = arith.maximumf %50, %51 : vector<8x1xf32>
    %c1_8 = arith.constant 1 : index
    %53 = memref.load %arg4[%c1_8] : memref<10xf32, #tpu.memory_space<smem>>
    %54 = vector.broadcast %53 : f32 to vector<8x1xf32>
    %55 = arith.mulf %52, %54 : vector<8x1xf32>
    %56 = arith.addf %32, %55 : vector<8x1xf32>
    %c2 = arith.constant 2 : index
    %57 = memref.load %arg2[%c2] : memref<40xf32, #tpu.memory_space<smem>>
    %58 = vector.broadcast %57 : f32 to vector<8x1xf32>
    %59 = arith.mulf %1, %58 : vector<8x1xf32>
    %c12 = arith.constant 12 : index
    %60 = memref.load %arg2[%c12] : memref<40xf32, #tpu.memory_space<smem>>
    %61 = vector.broadcast %60 : f32 to vector<8x1xf32>
    %62 = arith.mulf %2, %61 : vector<8x1xf32>
    %63 = arith.addf %59, %62 : vector<8x1xf32>
    %c22 = arith.constant 22 : index
    %64 = memref.load %arg2[%c22] : memref<40xf32, #tpu.memory_space<smem>>
    %65 = vector.broadcast %64 : f32 to vector<8x1xf32>
    %66 = arith.mulf %3, %65 : vector<8x1xf32>
    %67 = arith.addf %63, %66 : vector<8x1xf32>
    %c32 = arith.constant 32 : index
    %68 = memref.load %arg2[%c32] : memref<40xf32, #tpu.memory_space<smem>>
    %69 = vector.broadcast %68 : f32 to vector<8x1xf32>
    %70 = arith.mulf %4, %69 : vector<8x1xf32>
    %71 = arith.addf %67, %70 : vector<8x1xf32>
    %c2_9 = arith.constant 2 : index
    %72 = memref.load %arg3[%c2_9] : memref<10xf32, #tpu.memory_space<smem>>
    %73 = vector.broadcast %72 : f32 to vector<8x1xf32>
    %74 = arith.addf %71, %73 : vector<8x1xf32>
    %cst_10 = arith.constant 0.000000e+00 : f32
    %75 = vector.broadcast %cst_10 : f32 to vector<8x1xf32>
    %76 = arith.maximumf %74, %75 : vector<8x1xf32>
    %c2_11 = arith.constant 2 : index
    %77 = memref.load %arg4[%c2_11] : memref<10xf32, #tpu.memory_space<smem>>
    %78 = vector.broadcast %77 : f32 to vector<8x1xf32>
    %79 = arith.mulf %76, %78 : vector<8x1xf32>
    %80 = arith.addf %56, %79 : vector<8x1xf32>
    %c3 = arith.constant 3 : index
    %81 = memref.load %arg2[%c3] : memref<40xf32, #tpu.memory_space<smem>>
    %82 = vector.broadcast %81 : f32 to vector<8x1xf32>
    %83 = arith.mulf %1, %82 : vector<8x1xf32>
    %c13 = arith.constant 13 : index
    %84 = memref.load %arg2[%c13] : memref<40xf32, #tpu.memory_space<smem>>
    %85 = vector.broadcast %84 : f32 to vector<8x1xf32>
    %86 = arith.mulf %2, %85 : vector<8x1xf32>
    %87 = arith.addf %83, %86 : vector<8x1xf32>
    %c23 = arith.constant 23 : index
    %88 = memref.load %arg2[%c23] : memref<40xf32, #tpu.memory_space<smem>>
    %89 = vector.broadcast %88 : f32 to vector<8x1xf32>
    %90 = arith.mulf %3, %89 : vector<8x1xf32>
    %91 = arith.addf %87, %90 : vector<8x1xf32>
    %c33 = arith.constant 33 : index
    %92 = memref.load %arg2[%c33] : memref<40xf32, #tpu.memory_space<smem>>
    %93 = vector.broadcast %92 : f32 to vector<8x1xf32>
    %94 = arith.mulf %4, %93 : vector<8x1xf32>
    %95 = arith.addf %91, %94 : vector<8x1xf32>
    %c3_12 = arith.constant 3 : index
    %96 = memref.load %arg3[%c3_12] : memref<10xf32, #tpu.memory_space<smem>>
    %97 = vector.broadcast %96 : f32 to vector<8x1xf32>
    %98 = arith.addf %95, %97 : vector<8x1xf32>
    %cst_13 = arith.constant 0.000000e+00 : f32
    %99 = vector.broadcast %cst_13 : f32 to vector<8x1xf32>
    %100 = arith.maximumf %98, %99 : vector<8x1xf32>
    %c3_14 = arith.constant 3 : index
    %101 = memref.load %arg4[%c3_14] : memref<10xf32, #tpu.memory_space<smem>>
    %102 = vector.broadcast %101 : f32 to vector<8x1xf32>
    %103 = arith.mulf %100, %102 : vector<8x1xf32>
    %104 = arith.addf %80, %103 : vector<8x1xf32>
    %c4 = arith.constant 4 : index
    %105 = memref.load %arg2[%c4] : memref<40xf32, #tpu.memory_space<smem>>
    %106 = vector.broadcast %105 : f32 to vector<8x1xf32>
    %107 = arith.mulf %1, %106 : vector<8x1xf32>
    %c14 = arith.constant 14 : index
    %108 = memref.load %arg2[%c14] : memref<40xf32, #tpu.memory_space<smem>>
    %109 = vector.broadcast %108 : f32 to vector<8x1xf32>
    %110 = arith.mulf %2, %109 : vector<8x1xf32>
    %111 = arith.addf %107, %110 : vector<8x1xf32>
    %c24 = arith.constant 24 : index
    %112 = memref.load %arg2[%c24] : memref<40xf32, #tpu.memory_space<smem>>
    %113 = vector.broadcast %112 : f32 to vector<8x1xf32>
    %114 = arith.mulf %3, %113 : vector<8x1xf32>
    %115 = arith.addf %111, %114 : vector<8x1xf32>
    %c34 = arith.constant 34 : index
    %116 = memref.load %arg2[%c34] : memref<40xf32, #tpu.memory_space<smem>>
    %117 = vector.broadcast %116 : f32 to vector<8x1xf32>
    %118 = arith.mulf %4, %117 : vector<8x1xf32>
    %119 = arith.addf %115, %118 : vector<8x1xf32>
    %c4_15 = arith.constant 4 : index
    %120 = memref.load %arg3[%c4_15] : memref<10xf32, #tpu.memory_space<smem>>
    %121 = vector.broadcast %120 : f32 to vector<8x1xf32>
    %122 = arith.addf %119, %121 : vector<8x1xf32>
    %cst_16 = arith.constant 0.000000e+00 : f32
    %123 = vector.broadcast %cst_16 : f32 to vector<8x1xf32>
    %124 = arith.maximumf %122, %123 : vector<8x1xf32>
    %c4_17 = arith.constant 4 : index
    %125 = memref.load %arg4[%c4_17] : memref<10xf32, #tpu.memory_space<smem>>
    %126 = vector.broadcast %125 : f32 to vector<8x1xf32>
    %127 = arith.mulf %124, %126 : vector<8x1xf32>
    %128 = arith.addf %104, %127 : vector<8x1xf32>
    %c5 = arith.constant 5 : index
    %129 = memref.load %arg2[%c5] : memref<40xf32, #tpu.memory_space<smem>>
    %130 = vector.broadcast %129 : f32 to vector<8x1xf32>
    %131 = arith.mulf %1, %130 : vector<8x1xf32>
    %c15 = arith.constant 15 : index
    %132 = memref.load %arg2[%c15] : memref<40xf32, #tpu.memory_space<smem>>
    %133 = vector.broadcast %132 : f32 to vector<8x1xf32>
    %134 = arith.mulf %2, %133 : vector<8x1xf32>
    %135 = arith.addf %131, %134 : vector<8x1xf32>
    %c25 = arith.constant 25 : index
    %136 = memref.load %arg2[%c25] : memref<40xf32, #tpu.memory_space<smem>>
    %137 = vector.broadcast %136 : f32 to vector<8x1xf32>
    %138 = arith.mulf %3, %137 : vector<8x1xf32>
    %139 = arith.addf %135, %138 : vector<8x1xf32>
    %c35 = arith.constant 35 : index
    %140 = memref.load %arg2[%c35] : memref<40xf32, #tpu.memory_space<smem>>
    %141 = vector.broadcast %140 : f32 to vector<8x1xf32>
    %142 = arith.mulf %4, %141 : vector<8x1xf32>
    %143 = arith.addf %139, %142 : vector<8x1xf32>
    %c5_18 = arith.constant 5 : index
    %144 = memref.load %arg3[%c5_18] : memref<10xf32, #tpu.memory_space<smem>>
    %145 = vector.broadcast %144 : f32 to vector<8x1xf32>
    %146 = arith.addf %143, %145 : vector<8x1xf32>
    %cst_19 = arith.constant 0.000000e+00 : f32
    %147 = vector.broadcast %cst_19 : f32 to vector<8x1xf32>
    %148 = arith.maximumf %146, %147 : vector<8x1xf32>
    %c5_20 = arith.constant 5 : index
    %149 = memref.load %arg4[%c5_20] : memref<10xf32, #tpu.memory_space<smem>>
    %150 = vector.broadcast %149 : f32 to vector<8x1xf32>
    %151 = arith.mulf %148, %150 : vector<8x1xf32>
    %152 = arith.addf %128, %151 : vector<8x1xf32>
    %c6 = arith.constant 6 : index
    %153 = memref.load %arg2[%c6] : memref<40xf32, #tpu.memory_space<smem>>
    %154 = vector.broadcast %153 : f32 to vector<8x1xf32>
    %155 = arith.mulf %1, %154 : vector<8x1xf32>
    %c16 = arith.constant 16 : index
    %156 = memref.load %arg2[%c16] : memref<40xf32, #tpu.memory_space<smem>>
    %157 = vector.broadcast %156 : f32 to vector<8x1xf32>
    %158 = arith.mulf %2, %157 : vector<8x1xf32>
    %159 = arith.addf %155, %158 : vector<8x1xf32>
    %c26 = arith.constant 26 : index
    %160 = memref.load %arg2[%c26] : memref<40xf32, #tpu.memory_space<smem>>
    %161 = vector.broadcast %160 : f32 to vector<8x1xf32>
    %162 = arith.mulf %3, %161 : vector<8x1xf32>
    %163 = arith.addf %159, %162 : vector<8x1xf32>
    %c36 = arith.constant 36 : index
    %164 = memref.load %arg2[%c36] : memref<40xf32, #tpu.memory_space<smem>>
    %165 = vector.broadcast %164 : f32 to vector<8x1xf32>
    %166 = arith.mulf %4, %165 : vector<8x1xf32>
    %167 = arith.addf %163, %166 : vector<8x1xf32>
    %c6_21 = arith.constant 6 : index
    %168 = memref.load %arg3[%c6_21] : memref<10xf32, #tpu.memory_space<smem>>
    %169 = vector.broadcast %168 : f32 to vector<8x1xf32>
    %170 = arith.addf %167, %169 : vector<8x1xf32>
    %cst_22 = arith.constant 0.000000e+00 : f32
    %171 = vector.broadcast %cst_22 : f32 to vector<8x1xf32>
    %172 = arith.maximumf %170, %171 : vector<8x1xf32>
    %c6_23 = arith.constant 6 : index
    %173 = memref.load %arg4[%c6_23] : memref<10xf32, #tpu.memory_space<smem>>
    %174 = vector.broadcast %173 : f32 to vector<8x1xf32>
    %175 = arith.mulf %172, %174 : vector<8x1xf32>
    %176 = arith.addf %152, %175 : vector<8x1xf32>
    %c7 = arith.constant 7 : index
    %177 = memref.load %arg2[%c7] : memref<40xf32, #tpu.memory_space<smem>>
    %178 = vector.broadcast %177 : f32 to vector<8x1xf32>
    %179 = arith.mulf %1, %178 : vector<8x1xf32>
    %c17 = arith.constant 17 : index
    %180 = memref.load %arg2[%c17] : memref<40xf32, #tpu.memory_space<smem>>
    %181 = vector.broadcast %180 : f32 to vector<8x1xf32>
    %182 = arith.mulf %2, %181 : vector<8x1xf32>
    %183 = arith.addf %179, %182 : vector<8x1xf32>
    %c27 = arith.constant 27 : index
    %184 = memref.load %arg2[%c27] : memref<40xf32, #tpu.memory_space<smem>>
    %185 = vector.broadcast %184 : f32 to vector<8x1xf32>
    %186 = arith.mulf %3, %185 : vector<8x1xf32>
    %187 = arith.addf %183, %186 : vector<8x1xf32>
    %c37 = arith.constant 37 : index
    %188 = memref.load %arg2[%c37] : memref<40xf32, #tpu.memory_space<smem>>
    %189 = vector.broadcast %188 : f32 to vector<8x1xf32>
    %190 = arith.mulf %4, %189 : vector<8x1xf32>
    %191 = arith.addf %187, %190 : vector<8x1xf32>
    %c7_24 = arith.constant 7 : index
    %192 = memref.load %arg3[%c7_24] : memref<10xf32, #tpu.memory_space<smem>>
    %193 = vector.broadcast %192 : f32 to vector<8x1xf32>
    %194 = arith.addf %191, %193 : vector<8x1xf32>
    %cst_25 = arith.constant 0.000000e+00 : f32
    %195 = vector.broadcast %cst_25 : f32 to vector<8x1xf32>
    %196 = arith.maximumf %194, %195 : vector<8x1xf32>
    %c7_26 = arith.constant 7 : index
    %197 = memref.load %arg4[%c7_26] : memref<10xf32, #tpu.memory_space<smem>>
    %198 = vector.broadcast %197 : f32 to vector<8x1xf32>
    %199 = arith.mulf %196, %198 : vector<8x1xf32>
    %200 = arith.addf %176, %199 : vector<8x1xf32>
    %c8 = arith.constant 8 : index
    %201 = memref.load %arg2[%c8] : memref<40xf32, #tpu.memory_space<smem>>
    %202 = vector.broadcast %201 : f32 to vector<8x1xf32>
    %203 = arith.mulf %1, %202 : vector<8x1xf32>
    %c18 = arith.constant 18 : index
    %204 = memref.load %arg2[%c18] : memref<40xf32, #tpu.memory_space<smem>>
    %205 = vector.broadcast %204 : f32 to vector<8x1xf32>
    %206 = arith.mulf %2, %205 : vector<8x1xf32>
    %207 = arith.addf %203, %206 : vector<8x1xf32>
    %c28 = arith.constant 28 : index
    %208 = memref.load %arg2[%c28] : memref<40xf32, #tpu.memory_space<smem>>
    %209 = vector.broadcast %208 : f32 to vector<8x1xf32>
    %210 = arith.mulf %3, %209 : vector<8x1xf32>
    %211 = arith.addf %207, %210 : vector<8x1xf32>
    %c38 = arith.constant 38 : index
    %212 = memref.load %arg2[%c38] : memref<40xf32, #tpu.memory_space<smem>>
    %213 = vector.broadcast %212 : f32 to vector<8x1xf32>
    %214 = arith.mulf %4, %213 : vector<8x1xf32>
    %215 = arith.addf %211, %214 : vector<8x1xf32>
    %c8_27 = arith.constant 8 : index
    %216 = memref.load %arg3[%c8_27] : memref<10xf32, #tpu.memory_space<smem>>
    %217 = vector.broadcast %216 : f32 to vector<8x1xf32>
    %218 = arith.addf %215, %217 : vector<8x1xf32>
    %cst_28 = arith.constant 0.000000e+00 : f32
    %219 = vector.broadcast %cst_28 : f32 to vector<8x1xf32>
    %220 = arith.maximumf %218, %219 : vector<8x1xf32>
    %c8_29 = arith.constant 8 : index
    %221 = memref.load %arg4[%c8_29] : memref<10xf32, #tpu.memory_space<smem>>
    %222 = vector.broadcast %221 : f32 to vector<8x1xf32>
    %223 = arith.mulf %220, %222 : vector<8x1xf32>
    %224 = arith.addf %200, %223 : vector<8x1xf32>
    %c9 = arith.constant 9 : index
    %225 = memref.load %arg2[%c9] : memref<40xf32, #tpu.memory_space<smem>>
    %226 = vector.broadcast %225 : f32 to vector<8x1xf32>
    %227 = arith.mulf %1, %226 : vector<8x1xf32>
    %c19 = arith.constant 19 : index
    %228 = memref.load %arg2[%c19] : memref<40xf32, #tpu.memory_space<smem>>
    %229 = vector.broadcast %228 : f32 to vector<8x1xf32>
    %230 = arith.mulf %2, %229 : vector<8x1xf32>
    %231 = arith.addf %227, %230 : vector<8x1xf32>
    %c29 = arith.constant 29 : index
    %232 = memref.load %arg2[%c29] : memref<40xf32, #tpu.memory_space<smem>>
    %233 = vector.broadcast %232 : f32 to vector<8x1xf32>
    %234 = arith.mulf %3, %233 : vector<8x1xf32>
    %235 = arith.addf %231, %234 : vector<8x1xf32>
    %c39 = arith.constant 39 : index
    %236 = memref.load %arg2[%c39] : memref<40xf32, #tpu.memory_space<smem>>
    %237 = vector.broadcast %236 : f32 to vector<8x1xf32>
    %238 = arith.mulf %4, %237 : vector<8x1xf32>
    %239 = arith.addf %235, %238 : vector<8x1xf32>
    %c9_30 = arith.constant 9 : index
    %240 = memref.load %arg3[%c9_30] : memref<10xf32, #tpu.memory_space<smem>>
    %241 = vector.broadcast %240 : f32 to vector<8x1xf32>
    %242 = arith.addf %239, %241 : vector<8x1xf32>
    %cst_31 = arith.constant 0.000000e+00 : f32
    %243 = vector.broadcast %cst_31 : f32 to vector<8x1xf32>
    %244 = arith.maximumf %242, %243 : vector<8x1xf32>
    %c9_32 = arith.constant 9 : index
    %245 = memref.load %arg4[%c9_32] : memref<10xf32, #tpu.memory_space<smem>>
    %246 = vector.broadcast %245 : f32 to vector<8x1xf32>
    %247 = arith.mulf %244, %246 : vector<8x1xf32>
    %248 = arith.addf %224, %247 : vector<8x1xf32>
    %c0_33 = arith.constant 0 : index
    %c0_34 = arith.constant 0 : index
    %249 = vector.load %arg6[%c0_33, %c0_34] : memref<8x1xf32, #tpu.memory_space<vmem>>, vector<8x1xf32>
    tpu.vector_store %arg6[%c0_33, %c0_34], %248 {strides = array<i32>} : memref<8x1xf32, #tpu.memory_space<vmem>>, vector<8x1xf32>,
    return
  }
  func.func @transform_0(%arg0: i32) -> (i32, i32) {
    %c0_i32 = arith.constant 0 : i32
    %c0_i32_0 = arith.constant 0 : i32
    %c0_i32_1 = arith.constant 0 : i32
    return %c0_i32, %c0_i32_0 : i32, i32
  }
  func.func @transform_1(%arg0: i32) -> i32 {
    %c0_i32 = arith.constant 0 : i32
    %c0_i32_0 = arith.constant 0 : i32
    return %c0_i32 : i32
  }
  func.func @transform_2(%arg0: i32) -> i32 {
    %c0_i32 = arith.constant 0 : i32
    %c0_i32_0 = arith.constant 0 : i32
    return %c0_i32 : i32
  }
  func.func @transform_3(%arg0: i32) -> i32 {
    %c0_i32 = arith.constant 0 : i32
    %c0_i32_0 = arith.constant 0 : i32
    return %c0_i32 : i32
  }
  func.func @transform_4(%arg0: i32) -> i32 {
    %c0_i32 = arith.constant 0 : i32
    %c0_i32_0 = arith.constant 0 : i32
    return %c0_i32 : i32
  }
  func.func @transform_5(%arg0: i32) -> (i32, i32) {
    %c0_i32 = arith.constant 0 : i32
    %c0_i32_0 = arith.constant 0 : i32
    %c0_i32_1 = arith.constant 0 : i32
    return %c0_i32, %c0_i32_0 : i32, i32
  }
}

</mosaic_0001>

<llo_original>
// kernel: rl_model_forward.1
$region0: #{rl_model_forward.1}
  #allocation0 [shape = 'u32[]', space=smem, size = 0x4, offset = 0x4, fixed_abs, tag = 'smem constant byte address 0x4 - core index']
  #allocation1 [shape = 'u32[144,128]{1,0:T(1,128)}', space=vmem, size = 0x12000, scoped, tag = 'internal scratch']
  #allocation2 [shape = 'f32[1]{0:T(128)S(6)}', space=smem, size = 0x200, scoped, tag = 'scoped memory for rl_model_forward.1']
  %s0 = inlined_call_operand.vmem [shape: f32[8,4], index: 0, kind: input, shape index: {}]
  %s1 = inlined_call_operand.vmem [shape: f32[40], index: 1, kind: input, shape index: {}]
  %s2 = inlined_call_operand.vmem [shape: f32[10], index: 2, kind: input, shape index: {}]
  %s3 = inlined_call_operand.vmem [shape: f32[10], index: 3, kind: input, shape index: {}]
  %s4 = inlined_call_operand.<no memory space> [shape: f32[1], index: 4, kind: input, shape index: {}]
  %s5 = inlined_call_operand.vmem [shape: f32[8,1], index: 5, kind: output, shape index: {}]
  %s6 = sld [smem:[#allocation0]]
  $region42: #{rl_model_forward.1} parent=0
    _
  %s8 = ssub.s32 1, %s6
  %s9 = scalar_select 0, %s8, %s6
  %10 = sst [smem:[#allocation2]] %s4
  $region1: #{rl_model_forward.1} parent=0
    #allocation3 [shape = 'u8[512]{0}', space=smem, size = 0x200, scoped, tag = 'input window, operand 1, single buffered']
    #allocation4 [shape = 's32[1]{0}', space=sflag, size = 0x4, scoped, tag = 'scoped memory for rl_model_forward.1']
    #allocation5 [shape = 'u8[512]{0}', space=smem, size = 0x200, scoped, tag = 'input window, operand 2, single buffered']
    #allocation6 [shape = 's32[1]{0}', space=sflag, size = 0x4, scoped, tag = 'scoped memory for rl_model_forward.1']
    #allocation7 [shape = 'u8[512]{0}', space=smem, size = 0x200, scoped, tag = 'input window, operand 3, single buffered']
    %11 = vsyncpa [#allocation4], 0
    %12 = vsyncpa [#allocation6], 0
    // Predicated region
    $region2: #{rl_model_forward.1} parent=1 // pred_check
      _
    $region3: #{rl_model_forward.1} parent=1 // pred_check_branch
      %14 = sbr.rel (0) target = $region5
    $region4: #{rl_model_forward.1} parent=1 // pred_region
      _
    $region5: #{rl_model_forward.1} parent=1 // pred_fallthru
      _
    // Predicated region
    $region6: #{rl_model_forward.1} parent=1 // pred_check
      _
    $region7: #{rl_model_forward.1} parent=1 // pred_check_branch
      %16 = sbr.rel (0) target = $region9
    $region8: #{rl_model_forward.1} parent=1 // pred_region
      %s18 = ssub.s32 16, 16
      %19 = vsyncadd [#allocation4], %s18
      %s21 = sshll.u32 %s1, 4
      %s22 = int_to_ptr.vmem [resolvable:$true] %s21
      %24 = dma.vmem_to_smem %s22, 16, [#allocation3], [#allocation4]
    $region9: #{rl_model_forward.1} parent=1 // pred_fallthru
      _
    // Predicated region
    $region10: #{rl_model_forward.1} parent=1 // pred_check
      _
    $region11: #{rl_model_forward.1} parent=1 // pred_check_branch
      %26 = sbr.rel (0) target = $region13
    $region12: #{rl_model_forward.1} parent=1 // pred_region
      %s28 = ssub.s32 16, 16
      %29 = vsyncadd [#allocation6], %s28
      %s31 = sshll.u32 %s2, 4
      %s32 = int_to_ptr.vmem [resolvable:$true] %s31
      %34 = dma.vmem_to_smem %s32, 16, [#allocation5], [#allocation6]
    $region13: #{rl_model_forward.1} parent=1 // pred_fallthru
      _
    // Predicated region
    $region14: #{rl_model_forward.1} parent=1 // pred_check
      _
    $region15: #{rl_model_forward.1} parent=1 // pred_check_branch
      %36 = sbr.rel (0) target = $region17
    $region16: #{rl_model_forward.1} parent=1 // pred_region
      %s38 = ssub.s32 16, 16
      %39 = vsyncadd [#allocation6], %s38
      %s41 = sshll.u32 %s3, 4
      %s42 = int_to_ptr.vmem [resolvable:$true] %s41
      %44 = dma.vmem_to_smem %s42, 16, [#allocation7], [#allocation6]
    $region17: #{rl_model_forward.1} parent=1 // pred_fallthru
      _
    // Predicated region
    $region18: #{rl_model_forward.1} parent=1 // pred_check
      _
    $region19: #{rl_model_forward.1} parent=1 // pred_check_branch
      %46 = sbr.rel (0) target = $region21
    $region20: #{rl_model_forward.1} parent=1 // pred_region
      _
    $region21: #{rl_model_forward.1} parent=1 // pred_fallthru
      _
    // Predicated region
    $region22: #{rl_model_forward.1} parent=1 // pred_check
      _
    $region23: #{rl_model_forward.1} parent=1 // pred_check_branch
      %48 = sbr.rel (0) target = $region25
    $region24: #{rl_model_forward.1} parent=1 // pred_region
      %49 = dma.done [#allocation4], 16
    $region25: #{rl_model_forward.1} parent=1 // pred_fallthru
      _
    // Predicated region
    $region26: #{rl_model_forward.1} parent=1 // pred_check
      _
    $region27: #{rl_model_forward.1} parent=1 // pred_check_branch
      %51 = sbr.rel (0) target = $region29
    $region28: #{rl_model_forward.1} parent=1 // pred_region
      %52 = dma.done [#allocation6], 16
    $region29: #{rl_model_forward.1} parent=1 // pred_fallthru
      _
    // Predicated region
    $region30: #{rl_model_forward.1} parent=1 // pred_check
      _
    $region31: #{rl_model_forward.1} parent=1 // pred_check_branch
      %54 = sbr.rel (0) target = $region33
    $region32: #{rl_model_forward.1} parent=1 // pred_region
      %55 = dma.done [#allocation6], 16
    $region33: #{rl_model_forward.1} parent=1 // pred_fallthru
      _
    %56 = sfence
    %v57 = vld [vmem:[%s0] sm:$0xff]
    %s58 = sld [smem:[#allocation2]]
    %v59 = vstv %s58
    %v60 = vadd.f32 %v59, 0.0
    %s61 = sld [smem:[#allocation3]]
    %v62 = vstv %s61
    %v63 = vmul.f32 %v57, %v62
    %s64 = sld [smem:[#allocation3 + $0xa]]
    %v65 = vstv %s64
    %v66 = vmul.f32 %v57, %v65
    %68 = vrot.lane.b32.xlu0 %v66, 127
    %v69 = vpop.permute.xlu0 %68
    %v71 = vadd.f32 %v63, %v69
    %s72 = sld [smem:[#allocation3 + $0x14]]
    %v73 = vstv %s72
    %v74 = vmul.f32 %v57, %v73
    %76 = vrot.lane.b32.xlu0 %v74, 126
    %v77 = vpop.permute.xlu0 %76
    %v79 = vadd.f32 %v71, %v77
    %s80 = sld [smem:[#allocation3 + $0x1e]]
    %v81 = vstv %s80
    %v82 = vmul.f32 %v57, %v81
    %84 = vrot.lane.b32.xlu0 %v82, 125
    %v85 = vpop.permute.xlu0 %84
    %v87 = vadd.f32 %v79, %v85
    %s88 = sld [smem:[#allocation5]]
    %v89 = vstv %s88
    %v90 = vadd.f32 %v87, %v89
    %v91 = vmax.f32 %v90, 0.0
    %s92 = sld [smem:[#allocation7]]
    %v93 = vstv %s92
    %v94 = vmul.f32 %v91, %v93
    %v95 = vadd.f32 %v60, %v94
    %s96 = sld [smem:[#allocation3 + $0x1]]
    %v97 = vstv %s96
    %v98 = vmul.f32 %v57, %v97
    %s99 = sld [smem:[#allocation3 + $0xb]]
    %v100 = vstv %s99
    %v101 = vmul.f32 %v57, %v100
    %103 = vrot.lane.b32.xlu0 %v101, 127
    %v104 = vpop.permute.xlu0 %103
    %v106 = vadd.f32 %v98, %v104
    %s107 = sld [smem:[#allocation3 + $0x15]]
    %v108 = vstv %s107
    %v109 = vmul.f32 %v57, %v108
    %111 = vrot.lane.b32.xlu0 %v109, 126
    %v112 = vpop.permute.xlu0 %111
    %v114 = vadd.f32 %v106, %v112
    %s115 = sld [smem:[#allocation3 + $0x1f]]
    %v116 = vstv %s115
    %v117 = vmul.f32 %v57, %v116
    %119 = vrot.lane.b32.xlu0 %v117, 125
    %v120 = vpop.permute.xlu0 %119
    %v122 = vadd.f32 %v114, %v120
    %s123 = sld [smem:[#allocation5 + $0x1]]
    %v124 = vstv %s123
    %v125 = vadd.f32 %v122, %v124
    %v126 = vmax.f32 %v125, 0.0
    %s127 = sld [smem:[#allocation7 + $0x1]]
    %v128 = vstv %s127
    %v129 = vmul.f32 %v126, %v128
    %v130 = vadd.f32 %v95, %v129
    %s131 = sld [smem:[#allocation3 + $0x2]]
    %v132 = vstv %s131
    %v133 = vmul.f32 %v57, %v132
    %s134 = sld [smem:[#allocation3 + $0xc]]
    %v135 = vstv %s134
    %v136 = vmul.f32 %v57, %v135
    %138 = vrot.lane.b32.xlu0 %v136, 127
    %v139 = vpop.permute.xlu0 %138
    %v141 = vadd.f32 %v133, %v139
    %s142 = sld [smem:[#allocation3 + $0x16]]
    %v143 = vstv %s142
    %v144 = vmul.f32 %v57, %v143
    %146 = vrot.lane.b32.xlu0 %v144, 126
    %v147 = vpop.permute.xlu0 %146
    %v149 = vadd.f32 %v141, %v147
    %s150 = sld [smem:[#allocation3 + $0x20]]
    %v151 = vstv %s150
    %v152 = vmul.f32 %v57, %v151
    %154 = vrot.lane.b32.xlu0 %v152, 125
    %v155 = vpop.permute.xlu0 %154
    %v157 = vadd.f32 %v149, %v155
    %s158 = sld [smem:[#allocation5 + $0x2]]
    %v159 = vstv %s158
    %v160 = vadd.f32 %v157, %v159
    %v161 = vmax.f32 %v160, 0.0
    %s162 = sld [smem:[#allocation7 + $0x2]]
    %v163 = vstv %s162
    %v164 = vmul.f32 %v161, %v163
    %v165 = vadd.f32 %v130, %v164
    %s166 = sld [smem:[#allocation3 + $0x3]]
    %v167 = vstv %s166
    %v168 = vmul.f32 %v57, %v167
    %s169 = sld [smem:[#allocation3 + $0xd]]
    %v170 = vstv %s169
    %v171 = vmul.f32 %v57, %v170
    %173 = vrot.lane.b32.xlu0 %v171, 127
    %v174 = vpop.permute.xlu0 %173
    %v176 = vadd.f32 %v168, %v174
    %s177 = sld [smem:[#allocation3 + $0x17]]
    %v178 = vstv %s177
    %v179 = vmul.f32 %v57, %v178
    %181 = vrot.lane.b32.xlu0 %v179, 126
    %v182 = vpop.permute.xlu0 %181
    %v184 = vadd.f32 %v176, %v182
    %s185 = sld [smem:[#allocation3 + $0x21]]
    %v186 = vstv %s185
    %v187 = vmul.f32 %v57, %v186
    %189 = vrot.lane.b32.xlu0 %v187, 125
    %v190 = vpop.permute.xlu0 %189
    %v192 = vadd.f32 %v184, %v190
    %s193 = sld [smem:[#allocation5 + $0x3]]
    %v194 = vstv %s193
    %v195 = vadd.f32 %v192, %v194
    %v196 = vmax.f32 %v195, 0.0
    %s197 = sld [smem:[#allocation7 + $0x3]]
    %v198 = vstv %s197
    %v199 = vmul.f32 %v196, %v198
    %v200 = vadd.f32 %v165, %v199
    %s201 = sld [smem:[#allocation3 + $0x4]]
    %v202 = vstv %s201
    %v203 = vmul.f32 %v57, %v202
    %s204 = sld [smem:[#allocation3 + $0xe]]
    %v205 = vstv %s204
    %v206 = vmul.f32 %v57, %v205
    %208 = vrot.lane.b32.xlu0 %v206, 127
    %v209 = vpop.permute.xlu0 %208
    %v211 = vadd.f32 %v203, %v209
    %s212 = sld [smem:[#allocation3 + $0x18]]
    %v213 = vstv %s212
    %v214 = vmul.f32 %v57, %v213
    %216 = vrot.lane.b32.xlu0 %v214, 126
    %v217 = vpop.permute.xlu0 %216
    %v219 = vadd.f32 %v211, %v217
    %s220 = sld [smem:[#allocation3 + $0x22]]
    %v221 = vstv %s220
    %v222 = vmul.f32 %v57, %v221
    %224 = vrot.lane.b32.xlu0 %v222, 125
    %v225 = vpop.permute.xlu0 %224
    %v227 = vadd.f32 %v219, %v225
    %s228 = sld [smem:[#allocation5 + $0x4]]
    %v229 = vstv %s228
    %v230 = vadd.f32 %v227, %v229
    %v231 = vmax.f32 %v230, 0.0
    %s232 = sld [smem:[#allocation7 + $0x4]]
    %v233 = vstv %s232
    %v234 = vmul.f32 %v231, %v233
    %v235 = vadd.f32 %v200, %v234
    %s236 = sld [smem:[#allocation3 + $0x5]]
    %v237 = vstv %s236
    %v238 = vmul.f32 %v57, %v237
    %s239 = sld [smem:[#allocation3 + $0xf]]
    %v240 = vstv %s239
    %v241 = vmul.f32 %v57, %v240
    %243 = vrot.lane.b32.xlu0 %v241, 127
    %v244 = vpop.permute.xlu0 %243
    %v246 = vadd.f32 %v238, %v244
    %s247 = sld [smem:[#allocation3 + $0x19]]
    %v248 = vstv %s247
    %v249 = vmul.f32 %v57, %v248
    %251 = vrot.lane.b32.xlu0 %v249, 126
    %v252 = vpop.permute.xlu0 %251
    %v254 = vadd.f32 %v246, %v252
    %s255 = sld [smem:[#allocation3 + $0x23]]
    %v256 = vstv %s255
    %v257 = vmul.f32 %v57, %v256
    %259 = vrot.lane.b32.xlu0 %v257, 125
    %v260 = vpop.permute.xlu0 %259
    %v262 = vadd.f32 %v254, %v260
    %s263 = sld [smem:[#allocation5 + $0x5]]
    %v264 = vstv %s263
    %v265 = vadd.f32 %v262, %v264
    %v266 = vmax.f32 %v265, 0.0
    %s267 = sld [smem:[#allocation7 + $0x5]]
    %v268 = vstv %s267
    %v269 = vmul.f32 %v266, %v268
    %v270 = vadd.f32 %v235, %v269
    %s271 = sld [smem:[#allocation3 + $0x6]]
    %v272 = vstv %s271
    %v273 = vmul.f32 %v57, %v272
    %s274 = sld [smem:[#allocation3 + $0x10]]
    %v275 = vstv %s274
    %v276 = vmul.f32 %v57, %v275
    %278 = vrot.lane.b32.xlu0 %v276, 127
    %v279 = vpop.permute.xlu0 %278
    %v281 = vadd.f32 %v273, %v279
    %s282 = sld [smem:[#allocation3 + $0x1a]]
    %v283 = vstv %s282
    %v284 = vmul.f32 %v57, %v283
    %286 = vrot.lane.b32.xlu0 %v284, 126
    %v287 = vpop.permute.xlu0 %286
    %v289 = vadd.f32 %v281, %v287
    %s290 = sld [smem:[#allocation3 + $0x24]]
    %v291 = vstv %s290
    %v292 = vmul.f32 %v57, %v291
    %294 = vrot.lane.b32.xlu0 %v292, 125
    %v295 = vpop.permute.xlu0 %294
    %v297 = vadd.f32 %v289, %v295
    %s298 = sld [smem:[#allocation5 + $0x6]]
    %v299 = vstv %s298
    %v300 = vadd.f32 %v297, %v299
    %v301 = vmax.f32 %v300, 0.0
    %s302 = sld [smem:[#allocation7 + $0x6]]
    %v303 = vstv %s302
    %v304 = vmul.f32 %v301, %v303
    %v305 = vadd.f32 %v270, %v304
    %s306 = sld [smem:[#allocation3 + $0x7]]
    %v307 = vstv %s306
    %v308 = vmul.f32 %v57, %v307
    %s309 = sld [smem:[#allocation3 + $0x11]]
    %v310 = vstv %s309
    %v311 = vmul.f32 %v57, %v310
    %313 = vrot.lane.b32.xlu0 %v311, 127
    %v314 = vpop.permute.xlu0 %313
    %v316 = vadd.f32 %v308, %v314
    %s317 = sld [smem:[#allocation3 + $0x1b]]
    %v318 = vstv %s317
    %v319 = vmul.f32 %v57, %v318
    %321 = vrot.lane.b32.xlu0 %v319, 126
    %v322 = vpop.permute.xlu0 %321
    %v324 = vadd.f32 %v316, %v322
    %s325 = sld [smem:[#allocation3 + $0x25]]
    %v326 = vstv %s325
    %v327 = vmul.f32 %v57, %v326
    %329 = vrot.lane.b32.xlu0 %v327, 125
    %v330 = vpop.permute.xlu0 %329
    %v332 = vadd.f32 %v324, %v330
    %s333 = sld [smem:[#allocation5 + $0x7]]
    %v334 = vstv %s333
    %v335 = vadd.f32 %v332, %v334
    %v336 = vmax.f32 %v335, 0.0
    %s337 = sld [smem:[#allocation7 + $0x7]]
    %v338 = vstv %s337
    %v339 = vmul.f32 %v336, %v338
    %v340 = vadd.f32 %v305, %v339
    %s341 = sld [smem:[#allocation3 + $0x8]]
    %v342 = vstv %s341
    %v343 = vmul.f32 %v57, %v342
    %s344 = sld [smem:[#allocation3 + $0x12]]
    %v345 = vstv %s344
    %v346 = vmul.f32 %v57, %v345
    %348 = vrot.lane.b32.xlu0 %v346, 127
    %v349 = vpop.permute.xlu0 %348
    %v351 = vadd.f32 %v343, %v349
    %s352 = sld [smem:[#allocation3 + $0x1c]]
    %v353 = vstv %s352
    %v354 = vmul.f32 %v57, %v353
    %356 = vrot.lane.b32.xlu0 %v354, 126
    %v357 = vpop.permute.xlu0 %356
    %v359 = vadd.f32 %v351, %v357
    %s360 = sld [smem:[#allocation3 + $0x26]]
    %v361 = vstv %s360
    %v362 = vmul.f32 %v57, %v361
    %364 = vrot.lane.b32.xlu0 %v362, 125
    %v365 = vpop.permute.xlu0 %364
    %v367 = vadd.f32 %v359, %v365
    %s368 = sld [smem:[#allocation5 + $0x8]]
    %v369 = vstv %s368
    %v370 = vadd.f32 %v367, %v369
    %v371 = vmax.f32 %v370, 0.0
    %s372 = sld [smem:[#allocation7 + $0x8]]
    %v373 = vstv %s372
    %v374 = vmul.f32 %v371, %v373
    %v375 = vadd.f32 %v340, %v374
    %s376 = sld [smem:[#allocation3 + $0x9]]
    %v377 = vstv %s376
    %v378 = vmul.f32 %v57, %v377
    %s379 = sld [smem:[#allocation3 + $0x13]]
    %v380 = vstv %s379
    %v381 = vmul.f32 %v57, %v380
    %383 = vrot.lane.b32.xlu0 %v381, 127
    %v384 = vpop.permute.xlu0 %383
    %v386 = vadd.f32 %v378, %v384
    %s387 = sld [smem:[#allocation3 + $0x1d]]
    %v388 = vstv %s387
    %v389 = vmul.f32 %v57, %v388
    %391 = vrot.lane.b32.xlu0 %v389, 126
    %v392 = vpop.permute.xlu0 %391
    %v394 = vadd.f32 %v386, %v392
    %s395 = sld [smem:[#allocation3 + $0x27]]
    %v396 = vstv %s395
    %v397 = vmul.f32 %v57, %v396
    %399 = vrot.lane.b32.xlu0 %v397, 125
    %v400 = vpop.permute.xlu0 %399
    %v402 = vadd.f32 %v394, %v400
    %s403 = sld [smem:[#allocation5 + $0x9]]
    %v404 = vstv %s403
    %v405 = vadd.f32 %v402, %v404
    %v406 = vmax.f32 %v405, 0.0
    %s407 = sld [smem:[#allocation7 + $0x9]]
    %v408 = vstv %s407
    %v409 = vmul.f32 %v406, %v408
    %v410 = vadd.f32 %v375, %v409
    %vm411 = vcmask 7168
    %412 = vst.msk [vmem:[%s5] sm:$0xff] %vm411, %v410
    // Predicated region
    $region34: #{rl_model_forward.1} parent=1 // pred_check
      _
    $region35: #{rl_model_forward.1} parent=1 // pred_check_branch
      %414 = sbr.rel (0) target = $region37
    $region36: #{rl_model_forward.1} parent=1 // pred_region
      _
    $region37: #{rl_model_forward.1} parent=1 // pred_fallthru
      _
    // Predicated region
    $region38: #{rl_model_forward.1} parent=1 // pred_check
      _
    $region39: #{rl_model_forward.1} parent=1 // pred_check_branch
      %416 = sbr.rel (0) target = $region41
    $region40: #{rl_model_forward.1} parent=1 // pred_region
      _
    $region41: #{rl_model_forward.1} parent=1 // pred_fallthru
      _
    %417 = vsyncpa [#allocation4], 1
    %418 = vsyncpa [#allocation6], 1

</llo_original>
